<compile_context>
chip_gen: v5e
topology: v5e:2x2
jax: 0.10.0
libtpu: 0.0.40
codegen_flags: <defaults>
</compile_context>

<pallas_src>
import functools

import jax
import jax.numpy as jnp
from jax.experimental import pallas as pl
from jax.experimental.pallas import tpu as pltpu

NOISE_LEVEL = 0.1
AUGMENT_PROB = 0.5

# Tile ceilings: ~1 MiB f32 blocks -> x, noise, out double-buffered ~= 6 MiB VMEM,
# comfortably inside the scoped-VMEM default on every chip (16 MiB v5e, 32 MiB v6e/v7x).
_MAX_ROW_TILE = 256   # sublane axis (B*C rows)
_MAX_L_TILE = 1024    # lane axis (signal length)


def _pick_tile(dim, max_tile, align):
    """Largest legal block <= max_tile: full extent if it fits, else a multiple of align."""
    if dim <= max_tile:
        return dim
    return max((max_tile // align) * align, align)


def _white_noise_kernel(x_ref, noise_ref, mask_ref, o_ref, *, noise_level):
    # mask_ref is (row_tile, 1): 0/1 per (batch, channel) row, broadcast over L.
    scale = jnp.asarray(noise_level, dtype=x_ref.dtype)
    o_ref[...] = x_ref[...] + noise_ref[...] * scale * mask_ref[...]


def white_noise_augment(x, key, noise_level=NOISE_LEVEL, augment_prob=AUGMENT_PROB):
    """x: [B, C, L] float array. Returns augmented array of the same shape/dtype."""
    b, c, l = x.shape
    rows = b * c
    x2 = x.reshape(rows, l)

    # Randomness (matches torch.randn_like / torch.rand semantics).
    knoise, kmask = jax.random.split(key)
    noise = jax.random.normal(knoise, (rows, l), dtype=x.dtype)
    mask = (jax.random.uniform(kmask, (rows, 1)) < augment_prob).astype(x.dtype)

    row_tile = _pick_tile(rows, _MAX_ROW_TILE, 8)
    l_tile = _pick_tile(l, _MAX_L_TILE, 128)
    grid = (pl.cdiv(rows, row_tile), pl.cdiv(l, l_tile))

    n = rows * l
    itemsize = jnp.dtype(x.dtype).itemsize
    cost = pl.CostEstimate(
        flops=3 * n,                                 # 2 muls + 1 add per element
        transcendentals=0,
        bytes_accessed=itemsize * (3 * n + rows),    # x + noise + out, plus mask
    )

    kernel = functools.partial(_white_noise_kernel, noise_level=noise_level)
    out2 = pl.pallas_call(
        kernel,
        out_shape=jax.ShapeDtypeStruct((rows, l), x.dtype),
        grid=grid,
        in_specs=[
            pl.BlockSpec((row_tile, l_tile), lambda i, j: (i, j)),   # x
            pl.BlockSpec((row_tile, l_tile), lambda i, j: (i, j)),   # noise
            pl.BlockSpec((row_tile, 1), lambda i, j: (i, 0)),        # per-row mask
        ],
        out_specs=pl.BlockSpec((row_tile, l_tile), lambda i, j: (i, j)),
        compiler_params=pltpu.CompilerParams(
            dimension_semantics=("parallel", "parallel"),
            vmem_limit_bytes=32 * 1024 * 1024,
        ),
        cost_estimate=cost,
        # TODO(synk): add input_output_aliases={0: 0} when the caller donates x.
    )(x2, noise, mask)
    return out2.reshape(b, c, l)


if __name__ == "__main__":
    key = jax.random.PRNGKey(0)
    kx, kaug = jax.random.split(key)
    # batch=2, channels=4, signal_length=128 (lane-dense last dim).
    x = jax.random.normal(kx, (2, 4, 128), dtype=jnp.float32)

    y = jax.block_until_ready(white_noise_augment(x, kaug))
    assert y.shape == x.shape and y.dtype == x.dtype

    # Pure-JAX reference using the same RNG stream as the wrapper.
    b, c, l = x.shape
    knoise, kmask = jax.random.split(kaug)
    noise_ref = jax.random.normal(knoise, (b * c, l), dtype=x.dtype).reshape(b, c, l)
    mask_ref = (jax.random.uniform(kmask, (b * c, 1)) < AUGMENT_PROB).astype(x.dtype)
    mask_ref = mask_ref.reshape(b, c, 1)
    ref = x + noise_ref * jnp.asarray(NOISE_LEVEL, x.dtype) * mask_ref
    assert jnp.allclose(y, ref, atol=1e-5, rtol=1e-5), "kernel output != reference"

    # Mask semantics: un-augmented (batch, channel) rows match the input exactly;
    # augmented rows are perturbed.
    row_changed = jnp.any(y != x, axis=-1)          # (B, C)
    expect = mask_ref[..., 0] > 0                   # (B, C)
    assert jnp.array_equal(row_changed, expect), "per-channel mask semantics violated"

    print("KERNEL_OK")
</pallas_src>

<mosaic_0001>
module attributes {stable_mosaic.version = 11 : i64} {
  func.func @_white_noise_kernel(%arg0: i32, %arg1: i32, %arg2: memref<8x128xf32, #tpu.memory_space<vmem>>, %arg3: memref<8x128xf32, #tpu.memory_space<vmem>>, %arg4: memref<8x1xf32, #tpu.memory_space<vmem>>, %arg5: memref<8x128xf32, #tpu.memory_space<vmem>>) attributes {dimension_semantics = [#tpu.dimension_semantics<parallel>, #tpu.dimension_semantics<parallel>], iteration_bounds = array<i64: 1, 1>, scalar_prefetch = 0 : i64, scratch_operands = 0 : i64, tpu.core_type = #tpu.core_type<tc>, window_params = [{transform_indices = @transform_0, window_bounds = array<i64: 8, 128>}, {transform_indices = @transform_1, window_bounds = array<i64: 8, 128>}, {transform_indices = @transform_2, window_bounds = array<i64: 8, 1>}, {transform_indices = @transform_3, window_bounds = array<i64: 8, 128>}]} {
    %c0 = arith.constant 0 : index
    %c0_0 = arith.constant 0 : index
    %0 = vector.load %arg2[%c0, %c0_0] : memref<8x128xf32, #tpu.memory_space<vmem>>, vector<8x128xf32>
    %c0_1 = arith.constant 0 : index
    %c0_2 = arith.constant 0 : index
    %1 = vector.load %arg3[%c0_1, %c0_2] : memref<8x128xf32, #tpu.memory_space<vmem>>, vector<8x128xf32>
    %cst = arith.constant 1.000000e-01 : f32
    %2 = vector.broadcast %cst : f32 to vector<8x128xf32>
    %3 = arith.mulf %1, %2 : vector<8x128xf32>
    %c0_3 = arith.constant 0 : index
    %c0_4 = arith.constant 0 : index
    %4 = vector.load %arg4[%c0_3, %c0_4] : memref<8x1xf32, #tpu.memory_space<vmem>>, vector<8x1xf32>
    %5 = vector.broadcast %4 : vector<8x1xf32> to vector<8x128xf32>
    %6 = arith.mulf %3, %5 : vector<8x128xf32>
    %7 = arith.addf %0, %6 : vector<8x128xf32>
    %c0_5 = arith.constant 0 : index
    %c0_6 = arith.constant 0 : index
    %8 = vector.load %arg5[%c0_5, %c0_6] : memref<8x128xf32, #tpu.memory_space<vmem>>, vector<8x128xf32>
    tpu.vector_store %arg5[%c0_5, %c0_6], %7 {strides = array<i32>} : memref<8x128xf32, #tpu.memory_space<vmem>>, vector<8x128xf32>,
    return
  }
  func.func @transform_0(%arg0: i32, %arg1: i32) -> (i32, i32) {
    %c0_i32 = arith.constant 0 : i32
    return %arg0, %arg1 : i32, i32
  }
  func.func @transform_1(%arg0: i32, %arg1: i32) -> (i32, i32) {
    %c0_i32 = arith.constant 0 : i32
    return %arg0, %arg1 : i32, i32
  }
  func.func @transform_2(%arg0: i32, %arg1: i32) -> (i32, i32) {
    %c0_i32 = arith.constant 0 : i32
    %c0_i32_0 = arith.constant 0 : i32
    return %arg0, %c0_i32 : i32, i32
  }
  func.func @transform_3(%arg0: i32, %arg1: i32) -> (i32, i32) {
    %c0_i32 = arith.constant 0 : i32
    return %arg0, %arg1 : i32, i32
  }
}

</mosaic_0001>

<llo_original>
// kernel: tpu_custom_call.1
$region0: #{tpu_custom_call.1}
  #allocation0 [shape = 'u32[]', space=smem, size = 0x4, offset = 0x4, fixed_abs, tag = 'smem constant byte address 0x4 - core index']
  #allocation1 [shape = 'u32[72,128]{1,0:T(1,128)}', space=vmem, size = 0x9000, scoped, tag = 'internal scratch']
  %s0 = inlined_call_operand.vmem [shape: f32[8,128], index: 0, kind: input, shape index: {}]
  %s1 = inlined_call_operand.hbm [shape: f32[8,128], index: 1, kind: input, shape index: {}]
  %s2 = inlined_call_operand.vmem [shape: f32[8,1], index: 2, kind: input, shape index: {}]
  %s3 = inlined_call_operand.hbm [shape: f32[8,128], index: 3, kind: output, shape index: {}]
  %s4 = sld [smem:[#allocation0]]
  $region26: #{tpu_custom_call.1} parent=0
    _
  %s6 = ssub.s32 1, %s4
  %s7 = scalar_select 0, %s6, %s4
  $region1: #{tpu_custom_call.1} parent=0
    #allocation2 [shape = 'u8[4096]{0}', space=vmem, size = 0x1000, scoped, tag = 'input window, operand 1, single buffered']
    #allocation3 [shape = 's32[1]{0}', space=sflag, size = 0x4, scoped, tag = 'scoped memory for tpu_custom_call.1']
    #allocation4 [shape = 's32[1]{0}', space=sflag, size = 0x4, scoped, tag = 'scoped memory for tpu_custom_call.1']
    #allocation5 [shape = 'u8[4096]{0}', space=vmem, size = 0x1000, scoped, tag = 'output window, operand 0, single buffered']
    %8 = vsyncpa [#allocation3], 0
    %9 = vsyncpa [#allocation4], 0
    // Predicated region
    $region2: #{tpu_custom_call.1} parent=1 // pred_check
      _
    $region3: #{tpu_custom_call.1} parent=1 // pred_check_branch
      %11 = sbr.rel (0) target = $region5
    $region4: #{tpu_custom_call.1} parent=1 // pred_region
      _
    $region5: #{tpu_custom_call.1} parent=1 // pred_fallthru
      _
    // Predicated region
    $region6: #{tpu_custom_call.1} parent=1 // pred_check
      _
    $region7: #{tpu_custom_call.1} parent=1 // pred_check_branch
      %13 = sbr.rel (0) target = $region9
    $region8: #{tpu_custom_call.1} parent=1 // pred_region
      %15 = vsyncadd [#allocation3], 0
      %s17 = sshll.u32 %s1, 4
      %s18 = int_to_ptr.hbm [resolvable:$true] %s17
      %s19 = sshll.u32 [#allocation2], 4
      %s20 = int_to_ptr.vmem [resolvable:$true] %s19
      %22 = dma.hbm_to_vmem [thread:$0]  %s18, 128, %s20, [#allocation3]
    $region9: #{tpu_custom_call.1} parent=1 // pred_fallthru
      _
    // Predicated region
    $region10: #{tpu_custom_call.1} parent=1 // pred_check
      _
    $region11: #{tpu_custom_call.1} parent=1 // pred_check_branch
      %24 = sbr.rel (0) target = $region13
    $region12: #{tpu_custom_call.1} parent=1 // pred_region
      _
    $region13: #{tpu_custom_call.1} parent=1 // pred_fallthru
      _
    // Predicated region
    $region14: #{tpu_custom_call.1} parent=1 // pred_check
      _
    $region15: #{tpu_custom_call.1} parent=1 // pred_check_branch
      %26 = sbr.rel (0) target = $region17
    $region16: #{tpu_custom_call.1} parent=1 // pred_region
      %28 = dma.done [#allocation3], 128
    $region17: #{tpu_custom_call.1} parent=1 // pred_fallthru
      _
    %v29 = vld [vmem:[%s0] sm:$0xff]
    %v30 = vld [vmem:[#allocation2] sm:$0xff]
    %v31 = vmul.f32 %v30, 0.1
    %v32 = vld [vmem:[%s2] sm:$0xff]
    %34 = vset.pattern.permute.xlu0 0
    %35 = vperm.xlu0 %34, %v32
    %v36 = vpop.permute.xlu0 %35
    %v38 = vmul.f32 %v31, %v36
    %v39 = vadd.f32 %v29, %v38
    %40 = vst [vmem:[#allocation5] sm:$0xff] %v39
    // Predicated region
    $region18: #{tpu_custom_call.1} parent=1 // pred_check
      _
    $region19: #{tpu_custom_call.1} parent=1 // pred_check_branch
      %42 = sbr.rel (0) target = $region21
    $region20: #{tpu_custom_call.1} parent=1 // pred_region
      %44 = vsyncadd [#allocation4], 0
      %s46 = sshll.u32 [#allocation5], 4
      %s47 = int_to_ptr.vmem [resolvable:$true] %s46
      %s48 = sshll.u32 %s3, 4
      %s49 = int_to_ptr.hbm [resolvable:$true] %s48
      %51 = dma.vmem_to_hbm [thread:$0]  %s47, 128, %s49, [#allocation4]
    $region21: #{tpu_custom_call.1} parent=1 // pred_fallthru
      _
    // Predicated region
    $region22: #{tpu_custom_call.1} parent=1 // pred_check
      _
    $region23: #{tpu_custom_call.1} parent=1 // pred_check_branch
      %53 = sbr.rel (0) target = $region25
    $region24: #{tpu_custom_call.1} parent=1 // pred_region
      %55 = dma.done [#allocation4], 128
    $region25: #{tpu_custom_call.1} parent=1 // pred_fallthru
      _
    %56 = vsyncpa [#allocation3], 1
    %57 = vsyncpa [#allocation4], 1

</llo_original>
